<compile_context>
chip_gen: v7x
topology: tpu7x:2x2x1
jax: 0.10.0
libtpu: 0.0.40
codegen_flags: <defaults>
</compile_context>

<pallas_src>
import functools

import jax
import jax.numpy as jnp
from jax.experimental import pallas as pl
from jax.experimental.pallas import tpu as pltpu


LN_EPS = 1e-5  # PyTorch nn.LayerNorm default eps


def _round_up(n, m):
    return ((n + m - 1) // m) * m


def _ln_norm(h):
    """(h - mean) * rsqrt(var + eps); single-pass biased variance.

    The LayerNorm affine (gamma/beta) is folded into the next linear layer at
    pack time, so only normalization happens here.
    """
    mu = jnp.mean(h, axis=-1, keepdims=True)
    var = jnp.mean(h * h, axis=-1, keepdims=True) - mu * mu
    var = jnp.maximum(var, 0.0)  # guard tiny negative from cancellation
    return (h - mu) * jax.lax.rsqrt(var + LN_EPS)


def dueling_dqn_kernel(
    x_ref,
    w1_ref, b1_ref,
    w2_ref, b2_ref,          # LN1 affine folded in
    w3_ref, b3_ref,          # fused value|advantage hidden layer, LN2 folded in
    w4_ref, b4_ref,          # fused block-diagonal head, LN_v/LN_a folded in
    out_ref,
    *, h3, act_dim,
):
    def mm(a, w_ref, b_ref):
        w = w_ref[...]
        # Cast the LHS to the (bf16 by default) weight dtype; accumulate f32.
        y = jnp.dot(a.astype(w.dtype), w, preferred_element_type=jnp.float32)
        return y + b_ref[...]

    x = x_ref[...]

    # ---- feature trunk: Linear -> ReLU -> LayerNorm(normalize only) x2 ----
    h = _ln_norm(jnp.maximum(mm(x, w1_ref, b1_ref), 0.0))
    h = _ln_norm(jnp.maximum(mm(h, w2_ref, b2_ref), 0.0))

    # ---- fused value|advantage hidden layer: one [H2, 2*H3] matmul ----
    s = jnp.maximum(mm(h, w3_ref, b3_ref), 0.0)          # [TB, 2*H3]
    # h3 % 128 == 0, so both the split and the concat land on vreg lane
    # boundaries (no cross-lane relayout).
    n = jnp.concatenate([_ln_norm(s[:, :h3]),             # value-stream half
                         _ln_norm(s[:, h3:])], axis=-1)   # advantage-stream half

    # ---- fused block-diagonal head: [TB, OUT_PAD] lane-dense store ----
    # columns 0:A       -> advantages
    # column  OUT_PAD-1 -> value
    # all other columns are exactly zero (zero weights AND zero bias)
    va = mm(n, w4_ref, b4_ref)
    out_pad = va.shape[-1]
    v = va[:, out_pad - 1:out_pad]
    mean_a = (jnp.sum(va, axis=-1, keepdims=True) - v) * (1.0 / act_dim)
    # q = v + (a - mean_a); padded / value columns hold garbage and are sliced
    # off in the wrapper so the store stays a full 128-lane unmasked vst.
    out_ref[...] = (va + (v - mean_a)).astype(out_ref.dtype)


def pack_params(params, *, out_pad, matmul_dtype=jnp.bfloat16):
    """Fuse streams, fold every LayerNorm affine into the next linear layer,
    and cast matmul weights to matmul_dtype (biases stay f32)."""
    h3 = params["wv1"].shape[1]
    a = params["wa2"].shape[1]

    w1, b1 = params["w1"], params["b1"]

    # Fold LN1 affine (g1, be1) into layer 2:  (n*g1+be1)@W2+b2
    #   = n@(diag(g1)W2) + (be1@W2 + b2)
    w2 = params["w2"] * params["g1"].reshape(-1, 1)
    b2 = params["be1"] @ params["w2"] + params["b2"]

    # Fused hidden layer of both streams [H2, 2*H3]; fold LN2 affine.
    w3_raw = jnp.concatenate([params["wv1"], params["wa1"]], axis=1)
    b3_raw = jnp.concatenate([params["bv1"], params["ba1"]], axis=1)
    w3 = w3_raw * params["g2"].reshape(-1, 1)
    b3 = params["be2"] @ w3_raw + b3_raw

    # Block-diagonal, lane-dense head [2*H3, OUT_PAD]; fold LN_v/LN_a affine.
    w4_raw = jnp.zeros((2 * h3, out_pad), jnp.float32)
    w4_raw = w4_raw.at[:h3, out_pad - 1:out_pad].set(params["wv2"])
    w4_raw = w4_raw.at[h3:, :a].set(params["wa2"])
    b4_raw = jnp.zeros((1, out_pad), jnp.float32)
    b4_raw = b4_raw.at[:, out_pad - 1:out_pad].set(params["bv2"])
    b4_raw = b4_raw.at[:, :a].set(params["ba2"])

    g3 = jnp.concatenate([params["gv"], params["ga"]], axis=1)     # [1, 2*H3]
    be3 = jnp.concatenate([params["bev"], params["bea"]], axis=1)
    w4 = w4_raw * g3.reshape(-1, 1)
    b4 = be3 @ w4_raw + b4_raw
    # Dead columns of w4_raw are exactly zero, so be3 @ w4_raw is exactly zero
    # there too -> the sum-minus-value mean trick stays exact.

    cast = lambda w: w.astype(matmul_dtype)
    return [cast(w1), b1, cast(w2), b2, cast(w3), b3, cast(w4), b4]


def dueling_dqn_forward(x, params, *, batch_tile=None,
                        matmul_dtype=jnp.bfloat16):
    B, D = x.shape
    A = params["wa2"].shape[1]
    H3 = params["wv1"].shape[1]
    # Lane-aligned value/advantage split; non-multiples would force silent
    # cross-lane relayout copies in the kernel.
    assert H3 % 128 == 0, "hidden_dim3 must be a multiple of 128"

    OUT_PAD = _round_up(A + 1, 128)      # lane-dense output slab (A advs + V)

    if batch_tile is None:
        # Default: grid >= 2 so both v7x TensorCores get work, capped at 512
        # rows/step to amortize per-grid-step overhead on big DQN batches.
        # bf16 LHS packs 16 rows per vreg -> round tiles to 16.
        row_align = 16 if matmul_dtype == jnp.bfloat16 else 8
        batch_tile = min(max(_round_up(pl.cdiv(B, 2), row_align), row_align), 512)
    B_pad = _round_up(B, batch_tile)

    # Cast x once (halves its HBM read on the bf16 path); only pad rows when
    # B doesn't divide the tile. No K padding: block last dim == full array
    # dim is legal and the MXU pads K internally.
    x_p = x.astype(matmul_dtype)
    if B_pad != B:
        # Padded rows reach LayerNorm with var=0 -> rsqrt(eps): finite, and
        # they are sliced off below.
        x_p = jnp.pad(x_p, ((0, B_pad - B), (0, 0)))

    p_list = pack_params(params, out_pad=OUT_PAD, matmul_dtype=matmul_dtype)

    def full_spec(arr):
        # Grid-invariant full-array block (weights/biases, ~<1 MB total);
        # constant index_map -> fetched once, never re-DMAed.
        return pl.BlockSpec(arr.shape, lambda i: (0, 0))

    in_specs = [pl.BlockSpec((batch_tile, D), lambda i: (i, 0))]
    in_specs += [full_spec(p) for p in p_list]
    out_specs = pl.BlockSpec((batch_tile, OUT_PAD), lambda i: (i, 0))

    kernel = functools.partial(dueling_dqn_kernel, h3=H3, act_dim=A)

    out = pl.pallas_call(
        kernel,
        out_shape=jax.ShapeDtypeStruct((B_pad, OUT_PAD), jnp.float32),
        grid=(B_pad // batch_tile,),
        in_specs=in_specs,
        out_specs=out_specs,
        compiler_params=pltpu.CompilerParams(
            dimension_semantics=("parallel",),
            # Safe on v5e/v6e (128 MiB physical) and within v7x's 64 MiB even
            # at batch_tile=512.
            vmem_limit_bytes=32 * 1024 * 1024,
        ),
    )(x_p, *p_list)

    return out[:B, :A]


def init_params(key, input_dim, action_dim, h1, h2, h3):
    """PyTorch-like init (uniform +-1/sqrt(fan_in)). LayerNorm affines are
    made non-trivial here so the affine-folding path is actually exercised."""
    keys = jax.random.split(key, 20)

    def linear(kw, kb, fan_in, fan_out):
        bound = 1.0 / jnp.sqrt(fan_in)
        w = jax.random.uniform(kw, (fan_in, fan_out), jnp.float32, -bound, bound)
        b = jax.random.uniform(kb, (1, fan_out), jnp.float32, -bound, bound)
        return w, b

    def ln_affine(kg, kb, n):
        g = 1.0 + 0.2 * jax.random.normal(kg, (1, n), jnp.float32)
        b = 0.1 * jax.random.normal(kb, (1, n), jnp.float32)
        return g, b

    w1, b1 = linear(keys[0], keys[1], input_dim, h1)
    w2, b2 = linear(keys[2], keys[3], h1, h2)
    wv1, bv1 = linear(keys[4], keys[5], h2, h3)
    wv2, bv2 = linear(keys[6], keys[7], h3, 1)
    wa1, ba1 = linear(keys[8], keys[9], h2, h3)
    wa2, ba2 = linear(keys[10], keys[11], h3, action_dim)
    g1, be1 = ln_affine(keys[12], keys[13], h1)
    g2, be2 = ln_affine(keys[14], keys[15], h2)
    gv, bev = ln_affine(keys[16], keys[17], h3)
    ga, bea = ln_affine(keys[18], keys[19], h3)

    return {
        "w1": w1, "b1": b1, "g1": g1, "be1": be1,
        "w2": w2, "b2": b2, "g2": g2, "be2": be2,
        "wv1": wv1, "bv1": bv1, "gv": gv, "bev": bev,
        "wv2": wv2, "bv2": bv2,
        "wa1": wa1, "ba1": ba1, "ga": ga, "bea": bea,
        "wa2": wa2, "ba2": ba2,
    }


def dueling_dqn_ref(x, p):
    """Pure-JAX reference mirroring the PyTorch module (unfused params)."""
    def ln(h, g, b):
        mu = h.mean(-1, keepdims=True)
        var = ((h - mu) ** 2).mean(-1, keepdims=True)
        return (h - mu) / jnp.sqrt(var + LN_EPS) * g + b

    h = ln(jnp.maximum(x @ p["w1"] + p["b1"], 0.0), p["g1"], p["be1"])
    h = ln(jnp.maximum(h @ p["w2"] + p["b2"], 0.0), p["g2"], p["be2"])
    hv = ln(jnp.maximum(h @ p["wv1"] + p["bv1"], 0.0), p["gv"], p["bev"])
    v = hv @ p["wv2"] + p["bv2"]
    ha = ln(jnp.maximum(h @ p["wa1"] + p["ba1"], 0.0), p["ga"], p["bea"])
    a = ha @ p["wa2"] + p["ba2"]
    return v + (a - a.mean(axis=1, keepdims=True))


if __name__ == "__main__":
    # Small shapes consistent with the module: x is [batch, input_dim].
    B, INPUT_DIM, ACTION_DIM = 16, 64, 6
    H1, H2, H3 = 256, 128, 128

    key = jax.random.PRNGKey(0)
    kx, kp = jax.random.split(key)
    x = jax.random.normal(kx, (B, INPUT_DIM), jnp.float32)
    params = init_params(kp, INPUT_DIM, ACTION_DIM, H1, H2, H3)

    q_ref = dueling_dqn_ref(x, params)

    # Exact f32 path (checks stream fusion + LN-affine folding numerics).
    q_f32 = jax.block_until_ready(
        dueling_dqn_forward(x, params, matmul_dtype=jnp.float32))
    assert q_f32.shape == (B, ACTION_DIM)
    assert jnp.allclose(q_f32, q_ref, atol=2e-4, rtol=2e-4), "f32 mismatch vs reference"

    # Default bf16-weight fast path (MXU-native inputs, f32 accumulation,
    # LN/ReLU in f32 -> also safe on v5e).
    q_bf16 = jax.block_until_ready(dueling_dqn_forward(x, params))
    assert q_bf16.shape == (B, ACTION_DIM)
    assert float(jnp.max(jnp.abs(q_bf16 - q_ref))) < 0.5, "bf16 path diverged"

    print("KERNEL_OK")
</pallas_src>

<mosaic_0001>
module attributes {stable_mosaic.version = 11 : i64} {
  func.func @dueling_dqn_kernel(%arg0: i32, %arg1: memref<8x64xf32, #tpu.memory_space<vmem>>, %arg2: memref<64x256xf32, #tpu.memory_space<vmem>>, %arg3: memref<1x256xf32, #tpu.memory_space<vmem>>, %arg4: memref<256x128xf32, #tpu.memory_space<vmem>>, %arg5: memref<1x128xf32, #tpu.memory_space<vmem>>, %arg6: memref<128x256xf32, #tpu.memory_space<vmem>>, %arg7: memref<1x256xf32, #tpu.memory_space<vmem>>, %arg8: memref<256x128xf32, #tpu.memory_space<vmem>>, %arg9: memref<1x128xf32, #tpu.memory_space<vmem>>, %arg10: memref<8x128xf32, #tpu.memory_space<vmem>>) attributes {dimension_semantics = [#tpu.dimension_semantics<parallel>], iteration_bounds = array<i64: 2>, scalar_prefetch = 0 : i64, scratch_operands = 0 : i64, tpu.core_type = #tpu.core_type<tc>, window_params = [{transform_indices = @transform_0, window_bounds = array<i64: 8, 64>}, {pipeline_mode = #tpu.pipeline_mode<synchronous>, transform_indices = @transform_1, window_bounds = array<i64: 64, 256>}, {pipeline_mode = #tpu.pipeline_mode<synchronous>, transform_indices = @transform_2, window_bounds = array<i64: 1, 256>}, {pipeline_mode = #tpu.pipeline_mode<synchronous>, transform_indices = @transform_3, window_bounds = array<i64: 256, 128>}, {pipeline_mode = #tpu.pipeline_mode<synchronous>, transform_indices = @transform_4, window_bounds = array<i64: 1, 128>}, {pipeline_mode = #tpu.pipeline_mode<synchronous>, transform_indices = @transform_5, window_bounds = array<i64: 128, 256>}, {pipeline_mode = #tpu.pipeline_mode<synchronous>, transform_indices = @transform_6, window_bounds = array<i64: 1, 256>}, {pipeline_mode = #tpu.pipeline_mode<synchronous>, transform_indices = @transform_7, window_bounds = array<i64: 256, 128>}, {pipeline_mode = #tpu.pipeline_mode<synchronous>, transform_indices = @transform_8, window_bounds = array<i64: 1, 128>}, {transform_indices = @transform_9, window_bounds = array<i64: 8, 128>}]} {
    %c0 = arith.constant 0 : index
    %c0_0 = arith.constant 0 : index
    %0 = vector.load %arg1[%c0, %c0_0] : memref<8x64xf32, #tpu.memory_space<vmem>>, vector<8x64xf32>
    %c0_1 = arith.constant 0 : index
    %c0_2 = arith.constant 0 : index
    %1 = vector.load %arg2[%c0_1, %c0_2] : memref<64x256xf32, #tpu.memory_space<vmem>>, vector<64x256xf32>
    %cst = arith.constant dense<0.000000e+00> : vector<8x256xf32>
    %2 = tpu.matmul %0, %1, %cst {dimension_numbers = #tpu.dot_dimension_numbers<[1], [0], [0], [1], [0, 0, 1, 1], [], []>} : vector<8x64xf32>, vector<64x256xf32>, vector<8x256xf32> -> vector<8x256xf32>
    %c0_3 = arith.constant 0 : index
    %c0_4 = arith.constant 0 : index
    %3 = vector.load %arg3[%c0_3, %c0_4] : memref<1x256xf32, #tpu.memory_space<vmem>>, vector<1x256xf32>
    %4 = vector.broadcast %3 : vector<1x256xf32> to vector<8x256xf32>
    %5 = arith.addf %2, %4 : vector<8x256xf32>
    %cst_5 = arith.constant 0.000000e+00 : f32
    %6 = vector.broadcast %cst_5 : f32 to vector<8x256xf32>
    %7 = arith.maximumf %5, %6 : vector<8x256xf32>
    %cst_6 = arith.constant dense<0.000000e+00> : vector<8xf32>
    %8 = vector.multi_reduction <add>, %7, %cst_6 [1] : vector<8x256xf32> to vector<8xf32>
    %9 = vector.shape_cast %8 : vector<8xf32> to vector<8x1xf32>
    %cst_7 = arith.constant 2.560000e+02 : f32
    %10 = vector.broadcast %cst_7 : f32 to vector<8x1xf32>
    %11 = arith.divf %9, %10 : vector<8x1xf32>
    %12 = arith.mulf %7, %7 : vector<8x256xf32>
    %cst_8 = arith.constant dense<0.000000e+00> : vector<8xf32>
    %13 = vector.multi_reduction <add>, %12, %cst_8 [1] : vector<8x256xf32> to vector<8xf32>
    %14 = vector.shape_cast %13 : vector<8xf32> to vector<8x1xf32>
    %cst_9 = arith.constant 2.560000e+02 : f32
    %15 = vector.broadcast %cst_9 : f32 to vector<8x1xf32>
    %16 = arith.divf %14, %15 : vector<8x1xf32>
    %17 = arith.mulf %11, %11 : vector<8x1xf32>
    %18 = arith.subf %16, %17 : vector<8x1xf32>
    %cst_10 = arith.constant 0.000000e+00 : f32
    %19 = vector.broadcast %cst_10 : f32 to vector<8x1xf32>
    %20 = arith.maximumf %18, %19 : vector<8x1xf32>
    %21 = vector.broadcast %11 : vector<8x1xf32> to vector<8x256xf32>
    %22 = arith.subf %7, %21 : vector<8x256xf32>
    %cst_11 = arith.constant 9.99999974E-6 : f32
    %23 = vector.broadcast %cst_11 : f32 to vector<8x1xf32>
    %24 = arith.addf %20, %23 : vector<8x1xf32>
    %25 = math.rsqrt %24 : vector<8x1xf32>
    %26 = vector.broadcast %25 : vector<8x1xf32> to vector<8x256xf32>
    %27 = arith.mulf %22, %26 : vector<8x256xf32>
    %c0_12 = arith.constant 0 : index
    %c0_13 = arith.constant 0 : index
    %28 = vector.load %arg4[%c0_12, %c0_13] : memref<256x128xf32, #tpu.memory_space<vmem>>, vector<256x128xf32>
    %cst_14 = arith.constant dense<0.000000e+00> : vector<8x128xf32>
    %29 = tpu.matmul %27, %28, %cst_14 {dimension_numbers = #tpu.dot_dimension_numbers<[1], [0], [0], [1], [0, 0, 1, 1], [], []>} : vector<8x256xf32>, vector<256x128xf32>, vector<8x128xf32> -> vector<8x128xf32>
    %c0_15 = arith.constant 0 : index
    %c0_16 = arith.constant 0 : index
    %30 = vector.load %arg5[%c0_15, %c0_16] : memref<1x128xf32, #tpu.memory_space<vmem>>, vector<1x128xf32>
    %31 = vector.broadcast %30 : vector<1x128xf32> to vector<8x128xf32>
    %32 = arith.addf %29, %31 : vector<8x128xf32>
    %cst_17 = arith.constant 0.000000e+00 : f32
    %33 = vector.broadcast %cst_17 : f32 to vector<8x128xf32>
    %34 = arith.maximumf %32, %33 : vector<8x128xf32>
    %cst_18 = arith.constant dense<0.000000e+00> : vector<8xf32>
    %35 = vector.multi_reduction <add>, %34, %cst_18 [1] : vector<8x128xf32> to vector<8xf32>
    %36 = vector.shape_cast %35 : vector<8xf32> to vector<8x1xf32>
    %cst_19 = arith.constant 1.280000e+02 : f32
    %37 = vector.broadcast %cst_19 : f32 to vector<8x1xf32>
    %38 = arith.divf %36, %37 : vector<8x1xf32>
    %39 = arith.mulf %34, %34 : vector<8x128xf32>
    %cst_20 = arith.constant dense<0.000000e+00> : vector<8xf32>
    %40 = vector.multi_reduction <add>, %39, %cst_20 [1] : vector<8x128xf32> to vector<8xf32>
    %41 = vector.shape_cast %40 : vector<8xf32> to vector<8x1xf32>
    %cst_21 = arith.constant 1.280000e+02 : f32
    %42 = vector.broadcast %cst_21 : f32 to vector<8x1xf32>
    %43 = arith.divf %41, %42 : vector<8x1xf32>
    %44 = arith.mulf %38, %38 : vector<8x1xf32>
    %45 = arith.subf %43, %44 : vector<8x1xf32>
    %cst_22 = arith.constant 0.000000e+00 : f32
    %46 = vector.broadcast %cst_22 : f32 to vector<8x1xf32>
    %47 = arith.maximumf %45, %46 : vector<8x1xf32>
    %48 = vector.broadcast %38 : vector<8x1xf32> to vector<8x128xf32>
    %49 = arith.subf %34, %48 : vector<8x128xf32>
    %cst_23 = arith.constant 9.99999974E-6 : f32
    %50 = vector.broadcast %cst_23 : f32 to vector<8x1xf32>
    %51 = arith.addf %47, %50 : vector<8x1xf32>
    %52 = math.rsqrt %51 : vector<8x1xf32>
    %53 = vector.broadcast %52 : vector<8x1xf32> to vector<8x128xf32>
    %54 = arith.mulf %49, %53 : vector<8x128xf32>
    %c0_24 = arith.constant 0 : index
    %c0_25 = arith.constant 0 : index
    %55 = vector.load %arg6[%c0_24, %c0_25] : memref<128x256xf32, #tpu.memory_space<vmem>>, vector<128x256xf32>
    %cst_26 = arith.constant dense<0.000000e+00> : vector<8x256xf32>
    %56 = tpu.matmul %54, %55, %cst_26 {dimension_numbers = #tpu.dot_dimension_numbers<[1], [0], [0], [1], [0, 0, 1, 1], [], []>} : vector<8x128xf32>, vector<128x256xf32>, vector<8x256xf32> -> vector<8x256xf32>
    %c0_27 = arith.constant 0 : index
    %c0_28 = arith.constant 0 : index
    %57 = vector.load %arg7[%c0_27, %c0_28] : memref<1x256xf32, #tpu.memory_space<vmem>>, vector<1x256xf32>
    %58 = vector.broadcast %57 : vector<1x256xf32> to vector<8x256xf32>
    %59 = arith.addf %56, %58 : vector<8x256xf32>
    %cst_29 = arith.constant 0.000000e+00 : f32
    %60 = vector.broadcast %cst_29 : f32 to vector<8x256xf32>
    %61 = arith.maximumf %59, %60 : vector<8x256xf32>
    %62 = vector.extract_strided_slice %61 {offsets = [0, 0], sizes = [8, 128], strides = [1, 1]} : vector<8x256xf32> to vector<8x128xf32>
    %cst_30 = arith.constant dense<0.000000e+00> : vector<8xf32>
    %63 = vector.multi_reduction <add>, %62, %cst_30 [1] : vector<8x128xf32> to vector<8xf32>
    %64 = vector.shape_cast %63 : vector<8xf32> to vector<8x1xf32>
    %cst_31 = arith.constant 1.280000e+02 : f32
    %65 = vector.broadcast %cst_31 : f32 to vector<8x1xf32>
    %66 = arith.divf %64, %65 : vector<8x1xf32>
    %67 = arith.mulf %62, %62 : vector<8x128xf32>
    %cst_32 = arith.constant dense<0.000000e+00> : vector<8xf32>
    %68 = vector.multi_reduction <add>, %67, %cst_32 [1] : vector<8x128xf32> to vector<8xf32>
    %69 = vector.shape_cast %68 : vector<8xf32> to vector<8x1xf32>
    %cst_33 = arith.constant 1.280000e+02 : f32
    %70 = vector.broadcast %cst_33 : f32 to vector<8x1xf32>
    %71 = arith.divf %69, %70 : vector<8x1xf32>
    %72 = arith.mulf %66, %66 : vector<8x1xf32>
    %73 = arith.subf %71, %72 : vector<8x1xf32>
    %cst_34 = arith.constant 0.000000e+00 : f32
    %74 = vector.broadcast %cst_34 : f32 to vector<8x1xf32>
    %75 = arith.maximumf %73, %74 : vector<8x1xf32>
    %76 = vector.broadcast %66 : vector<8x1xf32> to vector<8x128xf32>
    %77 = arith.subf %62, %76 : vector<8x128xf32>
    %cst_35 = arith.constant 9.99999974E-6 : f32
    %78 = vector.broadcast %cst_35 : f32 to vector<8x1xf32>
    %79 = arith.addf %75, %78 : vector<8x1xf32>
    %80 = math.rsqrt %79 : vector<8x1xf32>
    %81 = vector.broadcast %80 : vector<8x1xf32> to vector<8x128xf32>
    %82 = arith.mulf %77, %81 : vector<8x128xf32>
    %83 = vector.extract_strided_slice %61 {offsets = [0, 128], sizes = [8, 128], strides = [1, 1]} : vector<8x256xf32> to vector<8x128xf32>
    %cst_36 = arith.constant dense<0.000000e+00> : vector<8xf32>
    %84 = vector.multi_reduction <add>, %83, %cst_36 [1] : vector<8x128xf32> to vector<8xf32>
    %85 = vector.shape_cast %84 : vector<8xf32> to vector<8x1xf32>
    %cst_37 = arith.constant 1.280000e+02 : f32
    %86 = vector.broadcast %cst_37 : f32 to vector<8x1xf32>
    %87 = arith.divf %85, %86 : vector<8x1xf32>
    %88 = arith.mulf %83, %83 : vector<8x128xf32>
    %cst_38 = arith.constant dense<0.000000e+00> : vector<8xf32>
    %89 = vector.multi_reduction <add>, %88, %cst_38 [1] : vector<8x128xf32> to vector<8xf32>
    %90 = vector.shape_cast %89 : vector<8xf32> to vector<8x1xf32>
    %cst_39 = arith.constant 1.280000e+02 : f32
    %91 = vector.broadcast %cst_39 : f32 to vector<8x1xf32>
    %92 = arith.divf %90, %91 : vector<8x1xf32>
    %93 = arith.mulf %87, %87 : vector<8x1xf32>
    %94 = arith.subf %92, %93 : vector<8x1xf32>
    %cst_40 = arith.constant 0.000000e+00 : f32
    %95 = vector.broadcast %cst_40 : f32 to vector<8x1xf32>
    %96 = arith.maximumf %94, %95 : vector<8x1xf32>
    %97 = vector.broadcast %87 : vector<8x1xf32> to vector<8x128xf32>
    %98 = arith.subf %83, %97 : vector<8x128xf32>
    %cst_41 = arith.constant 9.99999974E-6 : f32
    %99 = vector.broadcast %cst_41 : f32 to vector<8x1xf32>
    %100 = arith.addf %96, %99 : vector<8x1xf32>
    %101 = math.rsqrt %100 : vector<8x1xf32>
    %102 = vector.broadcast %101 : vector<8x1xf32> to vector<8x128xf32>
    %103 = arith.mulf %98, %102 : vector<8x128xf32>
    %104 = tpu.concatenate %82, %103 in 1 : vector<8x128xf32>, vector<8x128xf32> -> vector<8x256xf32>
    %c0_42 = arith.constant 0 : index
    %c0_43 = arith.constant 0 : index
    %105 = vector.load %arg8[%c0_42, %c0_43] : memref<256x128xf32, #tpu.memory_space<vmem>>, vector<256x128xf32>
    %cst_44 = arith.constant dense<0.000000e+00> : vector<8x128xf32>
    %106 = tpu.matmul %104, %105, %cst_44 {dimension_numbers = #tpu.dot_dimension_numbers<[1], [0], [0], [1], [0, 0, 1, 1], [], []>} : vector<8x256xf32>, vector<256x128xf32>, vector<8x128xf32> -> vector<8x128xf32>
    %c0_45 = arith.constant 0 : index
    %c0_46 = arith.constant 0 : index
    %107 = vector.load %arg9[%c0_45, %c0_46] : memref<1x128xf32, #tpu.memory_space<vmem>>, vector<1x128xf32>
    %108 = vector.broadcast %107 : vector<1x128xf32> to vector<8x128xf32>
    %109 = arith.addf %106, %108 : vector<8x128xf32>
    %110 = vector.extract_strided_slice %109 {offsets = [0, 127], sizes = [8, 1], strides = [1, 1]} : vector<8x128xf32> to vector<8x1xf32>
    %cst_47 = arith.constant dense<0.000000e+00> : vector<8xf32>
    %111 = vector.multi_reduction <add>, %109, %cst_47 [1] : vector<8x128xf32> to vector<8xf32>
    %112 = vector.shape_cast %111 : vector<8xf32> to vector<8x1xf32>
    %113 = arith.subf %112, %110 : vector<8x1xf32>
    %cst_48 = arith.constant 0.166666672 : f32
    %114 = vector.broadcast %cst_48 : f32 to vector<8x1xf32>
    %115 = arith.mulf %113, %114 : vector<8x1xf32>
    %116 = arith.subf %110, %115 : vector<8x1xf32>
    %117 = vector.broadcast %116 : vector<8x1xf32> to vector<8x128xf32>
    %118 = arith.addf %109, %117 : vector<8x128xf32>
    %c0_49 = arith.constant 0 : index
    %c0_50 = arith.constant 0 : index
    %119 = vector.load %arg10[%c0_49, %c0_50] : memref<8x128xf32, #tpu.memory_space<vmem>>, vector<8x128xf32>
    tpu.vector_store %arg10[%c0_49, %c0_50], %118 {strides = array<i32>} : memref<8x128xf32, #tpu.memory_space<vmem>>, vector<8x128xf32>,
    return
  }
  func.func @transform_0(%arg0: i32) -> (i32, i32) {
    %c0_i32 = arith.constant 0 : i32
    %c0_i32_0 = arith.constant 0 : i32
    return %arg0, %c0_i32 : i32, i32
  }
  func.func @transform_1(%arg0: i32) -> (i32, i32) {
    %c0_i32 = arith.constant 0 : i32
    %c0_i32_0 = arith.constant 0 : i32
    %c0_i32_1 = arith.constant 0 : i32
    return %c0_i32, %c0_i32_0 : i32, i32
  }
  func.func @transform_2(%arg0: i32) -> (i32, i32) {
    %c0_i32 = arith.constant 0 : i32
    %c0_i32_0 = arith.constant 0 : i32
    %c0_i32_1 = arith.constant 0 : i32
    return %c0_i32, %c0_i32_0 : i32, i32
  }
  func.func @transform_3(%arg0: i32) -> (i32, i32) {
    %c0_i32 = arith.constant 0 : i32
    %c0_i32_0 = arith.constant 0 : i32
    %c0_i32_1 = arith.constant 0 : i32
    return %c0_i32, %c0_i32_0 : i32, i32
  }
  func.func @transform_4(%arg0: i32) -> (i32, i32) {
    %c0_i32 = arith.constant 0 : i32
    %c0_i32_0 = arith.constant 0 : i32
    %c0_i32_1 = arith.constant 0 : i32
    return %c0_i32, %c0_i32_0 : i32, i32
  }
  func.func @transform_5(%arg0: i32) -> (i32, i32) {
    %c0_i32 = arith.constant 0 : i32
    %c0_i32_0 = arith.constant 0 : i32
    %c0_i32_1 = arith.constant 0 : i32
    return %c0_i32, %c0_i32_0 : i32, i32
  }
  func.func @transform_6(%arg0: i32) -> (i32, i32) {
    %c0_i32 = arith.constant 0 : i32
    %c0_i32_0 = arith.constant 0 : i32
    %c0_i32_1 = arith.constant 0 : i32
    return %c0_i32, %c0_i32_0 : i32, i32
  }
  func.func @transform_7(%arg0: i32) -> (i32, i32) {
    %c0_i32 = arith.constant 0 : i32
    %c0_i32_0 = arith.constant 0 : i32
    %c0_i32_1 = arith.constant 0 : i32
    return %c0_i32, %c0_i32_0 : i32, i32
  }
  func.func @transform_8(%arg0: i32) -> (i32, i32) {
    %c0_i32 = arith.constant 0 : i32
    %c0_i32_0 = arith.constant 0 : i32
    %c0_i32_1 = arith.constant 0 : i32
    return %c0_i32, %c0_i32_0 : i32, i32
  }
  func.func @transform_9(%arg0: i32) -> (i32, i32) {
    %c0_i32 = arith.constant 0 : i32
    %c0_i32_0 = arith.constant 0 : i32
    return %arg0, %c0_i32 : i32, i32
  }
}

</mosaic_0001>

<llo_original>
// kernel: tpu_custom_call.1
$region0: #{tpu_custom_call.1}
  #allocation0 [shape = 'u32[]', space=smem, size = 0x4, offset = 0x4, fixed_abs, tag = 'smem constant byte address 0x4 - core index']
  #allocation1 [shape = 'u32[144,128]{1,0:T(1,128)}', space=vmem, size = 0x12000, scoped, tag = 'internal scratch']
  %s0 = inlined_call_operand.hbm [shape: f32[16,64], index: 0, kind: input, shape index: {}]
  %s1 = inlined_call_operand.hbm [shape: f32[64,256], index: 1, kind: input, shape index: {}]
  %s2 = inlined_call_operand.vmem [shape: f32[1,256], index: 2, kind: input, shape index: {}]
  %s3 = inlined_call_operand.hbm [shape: f32[256,128], index: 3, kind: input, shape index: {}]
  %s4 = inlined_call_operand.vmem [shape: f32[1,128], index: 4, kind: input, shape index: {}]
  %s5 = inlined_call_operand.hbm [shape: f32[128,256], index: 5, kind: input, shape index: {}]
  %s6 = inlined_call_operand.vmem [shape: f32[1,256], index: 6, kind: input, shape index: {}]
  %s7 = inlined_call_operand.hbm [shape: f32[256,128], index: 7, kind: input, shape index: {}]
  %s8 = inlined_call_operand.vmem [shape: f32[1,128], index: 8, kind: input, shape index: {}]
  %s9 = inlined_call_operand.hbm [shape: f32[16,128], index: 9, kind: output, shape index: {}]
  %s10 = sld [smem:[#allocation0]]
  $region89: #{tpu_custom_call.1} parent=0
    _
  %s12 = ssub.s32 1, %s10
  %s13 = scalar_select 0, %s12, %s10
  $region1: #{tpu_custom_call.1} parent=0
    #allocation2 [shape = 'u8[8192]{0}', space=vmem, size = 0x2000, scoped, tag = 'input window, operand 0']
    #allocation3 [shape = 's32[2]{0}', space=sflag, size = 0x8, scoped, tag = 'scoped memory for tpu_custom_call.1']
    #allocation4 [shape = 's32[2]{0}', space=sflag, size = 0x8, scoped, tag = 'scoped memory for tpu_custom_call.1']
    #allocation5 [shape = 'u8[65536]{0}', space=vmem, size = 0x10000, scoped, tag = 'input window, operand 1, single buffered']
    #allocation6 [shape = 's32[1]{0}', space=sflag, size = 0x4, scoped, tag = 'scoped memory for tpu_custom_call.1']
    #allocation7 [shape = 'u8[131072]{0}', space=vmem, size = 0x20000, scoped, tag = 'input window, operand 3, single buffered']
    #allocation8 [shape = 'u8[131072]{0}', space=vmem, size = 0x20000, scoped, tag = 'input window, operand 5, single buffered']
    #allocation9 [shape = 's32[1]{0}', space=sflag, size = 0x4, scoped, tag = 'scoped memory for tpu_custom_call.1']
    #allocation10 [shape = 'u8[131072]{0}', space=vmem, size = 0x20000, scoped, tag = 'input window, operand 7, single buffered']
    #allocation11 [shape = 'u8[8192]{0}', space=vmem, size = 0x2000, scoped, tag = 'output window, operand 0']
    %14 = vsyncpa [#allocation3], 0
    %s15 = scalar_lea.sflag [#allocation3], 1
    %16 = vsyncpa %s15, 0
    %17 = vsyncpa [#allocation6], 0
    %18 = vsyncpa [#allocation9], 0
    %19 = vsyncpa [#allocation4], 0
    %s20 = scalar_lea.sflag [#allocation4], 1
    %21 = vsyncpa %s20, 0
    loop: start=0, step=1, limit=4
    $region2: #{tpu_custom_call.1} parent=1 // loop_pre_header
      _
    $region3: #{tpu_custom_call.1} parent=1 // loop_header
      %s23 = sphi 0, %s27
      %p24 = scmp.ge.s32.totalorder %s23, 4
      %s33 = sphi 0, %s35
      %s36 = sphi 0, %s33
      %s37 = sphi 0, %s36
      %s53 = sphi 0, %s37
      %s57 = sphi 0, %s57
      %s59 = sphi 0, %s57
      %s60 = sphi 0, %s59
      %s74 = sphi 0, %s60
      %s78 = sphi 0, %s78
      %s80 = sphi 0, %s78
      %s81 = sphi 0, %s80
      %s95 = sphi 0, %s81
      %s99 = sphi 0, %s99
      %s101 = sphi 0, %s99
      %s102 = sphi 0, %s101
      %s116 = sphi 0, %s102
      %s120 = sphi 0, %s120
      %s122 = sphi 0, %s120
      %s123 = sphi 0, %s122
      %s137 = sphi 0, %s123
      %s141 = sphi 0, %s141
      %s143 = sphi 0, %s141
      %s144 = sphi 0, %s143
      %s158 = sphi 0, %s144
      %s162 = sphi 0, %s162
      %s164 = sphi 0, %s162
      %s165 = sphi 0, %s164
      %s179 = sphi 0, %s165
      %s183 = sphi 0, %s183
      %s185 = sphi 0, %s183
      %s186 = sphi 0, %s185
      %s200 = sphi 0, %s186
      %s204 = sphi 0, %s204
      %s206 = sphi 0, %s204
      %s207 = sphi 0, %s206
      %s221 = sphi 0, %s207
      %s227 = sphi 0, %s229
      %s230 = sphi 0, %s227
      %s231 = sphi 0, %s230
      %s247 = sphi 0, %s231
    $region4: #{tpu_custom_call.1} parent=1 // loop_header_branch
      %26 = sbr.rel (%p24) target = $region8
    $region5: #{tpu_custom_call.1} parent=1 // loop_body
      %s28 = ssub.s32 %s23, 1
      %s29 = ssub.s32 %s23, 2
      %s30 = sadd.s32 %s23, 1
      %s31 = ssub.s32 %s23, %s30
      %p32 = scmp.eq.s32.totalorder %s31, 0
      %s34 = sadd.s32 %s33, 1
      %s35 = scalar_select %p32, %s33, %s34
      %p38 = pneg %p32
      %p39 = scmp.eq.s32.totalorder %s23, 1
      %p40 = por %p38, %p39
      %p41 = scmp.ne.s32.totalorder %s33, %s36
      %p42 = scmp.eq.s32.totalorder %s23, 0
      %p43 = por %p41, %p42
      %p44 = scmp.ne.s32.totalorder %s33, %s36
      %p45 = scmp.eq.s32.totalorder %s28, 1
      %p46 = por %p44, %p45
      %p47 = scmp.ne.s32.totalorder %s36, %s37
      %p48 = scmp.eq.s32.totalorder %s28, 0
      %p49 = por %p47, %p48
      %p50 = scmp.ne.s32.totalorder %s36, %s37
      %p51 = scmp.eq.s32.totalorder %s29, 1
      %p52 = por %p50, %p51
      %p54 = scmp.ne.s32.totalorder %s37, %s53
      %p55 = scmp.eq.s32.totalorder %s29, 0
      %p56 = por %p54, %p55
      %s58 = sadd.s32 %s57, 1
      %p61 = scmp.eq.s32.totalorder %s23, 1
      %p62 = scmp.ne.s32.totalorder %s57, %s59
      %p63 = scmp.eq.s32.totalorder %s23, 0
      %p64 = por %p62, %p63
      %p65 = scmp.ne.s32.totalorder %s57, %s59
      %p66 = scmp.eq.s32.totalorder %s28, 1
      %p67 = por %p65, %p66
      %p68 = scmp.ne.s32.totalorder %s59, %s60
      %p69 = scmp.eq.s32.totalorder %s28, 0
      %p70 = por %p68, %p69
      %p71 = scmp.ne.s32.totalorder %s59, %s60
      %p72 = scmp.eq.s32.totalorder %s29, 1
      %p73 = por %p71, %p72
      %p75 = scmp.ne.s32.totalorder %s60, %s74
      %p76 = scmp.eq.s32.totalorder %s29, 0
      %p77 = por %p75, %p76
      %s79 = sadd.s32 %s78, 1
      %p82 = scmp.eq.s32.totalorder %s23, 1
      %p83 = scmp.ne.s32.totalorder %s78, %s80
      %p84 = scmp.eq.s32.totalorder %s23, 0
      %p85 = por %p83, %p84
      %p86 = scmp.ne.s32.totalorder %s78, %s80
      %p87 = scmp.eq.s32.totalorder %s28, 1
      %p88 = por %p86, %p87
      %p89 = scmp.ne.s32.totalorder %s80, %s81
      %p90 = scmp.eq.s32.totalorder %s28, 0
      %p91 = por %p89, %p90
      %p92 = scmp.ne.s32.totalorder %s80, %s81
      %p93 = scmp.eq.s32.totalorder %s29, 1
      %p94 = por %p92, %p93
      %p96 = scmp.ne.s32.totalorder %s81, %s95
      %p97 = scmp.eq.s32.totalorder %s29, 0
      %p98 = por %p96, %p97
      %s100 = sadd.s32 %s99, 1
      %p103 = scmp.eq.s32.totalorder %s23, 1
      %p104 = scmp.ne.s32.totalorder %s99, %s101
      %p105 = scmp.eq.s32.totalorder %s23, 0
      %p106 = por %p104, %p105
      %p107 = scmp.ne.s32.totalorder %s99, %s101
      %p108 = scmp.eq.s32.totalorder %s28, 1
      %p109 = por %p107, %p108
      %p110 = scmp.ne.s32.totalorder %s101, %s102
      %p111 = scmp.eq.s32.totalorder %s28, 0
      %p112 = por %p110, %p111
      %p113 = scmp.ne.s32.totalorder %s101, %s102
      %p114 = scmp.eq.s32.totalorder %s29, 1
      %p115 = por %p113, %p114
      %p117 = scmp.ne.s32.totalorder %s102, %s116
      %p118 = scmp.eq.s32.totalorder %s29, 0
      %p119 = por %p117, %p118
      %s121 = sadd.s32 %s120, 1
      %p124 = scmp.eq.s32.totalorder %s23, 1
      %p125 = scmp.ne.s32.totalorder %s120, %s122
      %p126 = scmp.eq.s32.totalorder %s23, 0
      %p127 = por %p125, %p126
      %p128 = scmp.ne.s32.totalorder %s120, %s122
      %p129 = scmp.eq.s32.totalorder %s28, 1
      %p130 = por %p128, %p129
      %p131 = scmp.ne.s32.totalorder %s122, %s123
      %p132 = scmp.eq.s32.totalorder %s28, 0
      %p133 = por %p131, %p132
      %p134 = scmp.ne.s32.totalorder %s122, %s123
      %p135 = scmp.eq.s32.totalorder %s29, 1
      %p136 = por %p134, %p135
      %p138 = scmp.ne.s32.totalorder %s123, %s137
      %p139 = scmp.eq.s32.totalorder %s29, 0
      %p140 = por %p138, %p139
      %s142 = sadd.s32 %s141, 1
      %p145 = scmp.eq.s32.totalorder %s23, 1
      %p146 = scmp.ne.s32.totalorder %s141, %s143
      %p147 = scmp.eq.s32.totalorder %s23, 0
      %p148 = por %p146, %p147
      %p149 = scmp.ne.s32.totalorder %s141, %s143
      %p150 = scmp.eq.s32.totalorder %s28, 1
      %p151 = por %p149, %p150
      %p152 = scmp.ne.s32.totalorder %s143, %s144
      %p153 = scmp.eq.s32.totalorder %s28, 0
      %p154 = por %p152, %p153
      %p155 = scmp.ne.s32.totalorder %s143, %s144
      %p156 = scmp.eq.s32.totalorder %s29, 1
      %p157 = por %p155, %p156
      %p159 = scmp.ne.s32.totalorder %s144, %s158
      %p160 = scmp.eq.s32.totalorder %s29, 0
      %p161 = por %p159, %p160
      %s163 = sadd.s32 %s162, 1
      %p166 = scmp.eq.s32.totalorder %s23, 1
      %p167 = scmp.ne.s32.totalorder %s162, %s164
      %p168 = scmp.eq.s32.totalorder %s23, 0
      %p169 = por %p167, %p168
      %p170 = scmp.ne.s32.totalorder %s162, %s164
      %p171 = scmp.eq.s32.totalorder %s28, 1
      %p172 = por %p170, %p171
      %p173 = scmp.ne.s32.totalorder %s164, %s165
      %p174 = scmp.eq.s32.totalorder %s28, 0
      %p175 = por %p173, %p174
      %p176 = scmp.ne.s32.totalorder %s164, %s165
      %p177 = scmp.eq.s32.totalorder %s29, 1
      %p178 = por %p176, %p177
      %p180 = scmp.ne.s32.totalorder %s165, %s179
      %p181 = scmp.eq.s32.totalorder %s29, 0
      %p182 = por %p180, %p181
      %s184 = sadd.s32 %s183, 1
      %p187 = scmp.eq.s32.totalorder %s23, 1
      %p188 = scmp.ne.s32.totalorder %s183, %s185
      %p189 = scmp.eq.s32.totalorder %s23, 0
      %p190 = por %p188, %p189
      %p191 = scmp.ne.s32.totalorder %s183, %s185
      %p192 = scmp.eq.s32.totalorder %s28, 1
      %p193 = por %p191, %p192
      %p194 = scmp.ne.s32.totalorder %s185, %s186
      %p195 = scmp.eq.s32.totalorder %s28, 0
      %p196 = por %p194, %p195
      %p197 = scmp.ne.s32.totalorder %s185, %s186
      %p198 = scmp.eq.s32.totalorder %s29, 1
      %p199 = por %p197, %p198
      %p201 = scmp.ne.s32.totalorder %s186, %s200
      %p202 = scmp.eq.s32.totalorder %s29, 0
      %p203 = por %p201, %p202
      %s205 = sadd.s32 %s204, 1
      %p208 = scmp.eq.s32.totalorder %s23, 1
      %p209 = scmp.ne.s32.totalorder %s204, %s206
      %p210 = scmp.eq.s32.totalorder %s23, 0
      %p211 = por %p209, %p210
      %p212 = scmp.ne.s32.totalorder %s204, %s206
      %p213 = scmp.eq.s32.totalorder %s28, 1
      %p214 = por %p212, %p213
      %p215 = scmp.ne.s32.totalorder %s206, %s207
      %p216 = scmp.eq.s32.totalorder %s28, 0
      %p217 = por %p215, %p216
      %p218 = scmp.ne.s32.totalorder %s206, %s207
      %p219 = scmp.eq.s32.totalorder %s29, 1
      %p220 = por %p218, %p219
      %p222 = scmp.ne.s32.totalorder %s207, %s221
      %p223 = scmp.eq.s32.totalorder %s29, 0
      %p224 = por %p222, %p223
      %s225 = ssub.s32 %s23, %s30
      %p226 = scmp.eq.s32.totalorder %s225, 0
      %s228 = sadd.s32 %s227, 1
      %s229 = scalar_select %p226, %s227, %s228
      %p232 = pneg %p226
      %p233 = scmp.eq.s32.totalorder %s23, 1
      %p234 = por %p232, %p233
      %p235 = scmp.ne.s32.totalorder %s227, %s230
      %p236 = scmp.eq.s32.totalorder %s23, 0
      %p237 = por %p235, %p236
      %p238 = scmp.ne.s32.totalorder %s227, %s230
      %p239 = scmp.eq.s32.totalorder %s28, 1
      %p240 = por %p238, %p239
      %p241 = scmp.ne.s32.totalorder %s230, %s231
      %p242 = scmp.eq.s32.totalorder %s28, 0
      %p243 = por %p241, %p242
      %p244 = scmp.ne.s32.totalorder %s230, %s231
      %p245 = scmp.eq.s32.totalorder %s29, 1
      %p246 = por %p244, %p245
      %p248 = scmp.ne.s32.totalorder %s231, %s247
      %p249 = scmp.eq.s32.totalorder %s29, 0
      %p250 = por %p248, %p249
      %p251 = scmp.le.s32.totalorder 1, %s23
      %p252 = scmp.lt.s32.totalorder %s23, 3
      %p253 = pnand %p251, %p252
      %p254 = pneg %p253
      // Predicated region
      $region9: #{tpu_custom_call.1} parent=5 // pred_check
        _
      $region10: #{tpu_custom_call.1} parent=5 // pred_check_branch
        %256 = sbr.rel (%p253) target = $region12
      $region11: #{tpu_custom_call.1} parent=5 // pred_region
        %s257 = ssub.s32 %s23, 1
        // Predicated region
        $region13: #{tpu_custom_call.1} parent=11 // pred_check
          %p258 = pneg %p70
        $region14: #{tpu_custom_call.1} parent=11 // pred_check_branch
          %260 = sbr.rel (%p258) target = $region16
        $region15: #{tpu_custom_call.1} parent=11 // pred_region
          %s262 = ssub.s32 2048, 2048
          %263 = vsyncadd [#allocation6], %s262
          %s264 = sshll.u32 [#allocation5], 4
          %s265 = int_to_ptr.vmem [resolvable:$true] %s264
          %270 = dma.hbm_to_vmem [thread:$0]  %s1, 2048, %s265, [#allocation6], 256, 256, 16
        $region16: #{tpu_custom_call.1} parent=11 // pred_fallthru
          _
        // Predicated region
        $region17: #{tpu_custom_call.1} parent=11 // pred_check
          %p271 = pneg %p91
        $region18: #{tpu_custom_call.1} parent=11 // pred_check_branch
          %273 = sbr.rel (%p271) target = $region20
        $region19: #{tpu_custom_call.1} parent=11 // pred_region
          _
        $region20: #{tpu_custom_call.1} parent=11 // pred_fallthru
          _
        // Predicated region
        $region21: #{tpu_custom_call.1} parent=11 // pred_check
          %p274 = pneg %p112
        $region22: #{tpu_custom_call.1} parent=11 // pred_check_branch
          %276 = sbr.rel (%p274) target = $region24
        $region23: #{tpu_custom_call.1} parent=11 // pred_region
          %s278 = ssub.s32 4096, 4096
          %279 = vsyncadd [#allocation6], %s278
          %s280 = sshll.u32 [#allocation7], 4
          %s281 = int_to_ptr.vmem [resolvable:$true] %s280
          %286 = dma.hbm_to_vmem [thread:$0]  %s3, 4096, %s281, [#allocation6], 128, 128, 8
        $region24: #{tpu_custom_call.1} parent=11 // pred_fallthru
          _
        // Predicated region
        $region25: #{tpu_custom_call.1} parent=11 // pred_check
          %p287 = pneg %p133
        $region26: #{tpu_custom_call.1} parent=11 // pred_check_branch
          %289 = sbr.rel (%p287) target = $region28
        $region27: #{tpu_custom_call.1} parent=11 // pred_region
          _
        $region28: #{tpu_custom_call.1} parent=11 // pred_fallthru
          _
        // Predicated region
        $region29: #{tpu_custom_call.1} parent=11 // pred_check
          %p290 = pneg %p154
        $region30: #{tpu_custom_call.1} parent=11 // pred_check_branch
          %292 = sbr.rel (%p290) target = $region32
        $region31: #{tpu_custom_call.1} parent=11 // pred_region
          %s294 = ssub.s32 4096, 4096
          %295 = vsyncadd [#allocation9], %s294
          %s296 = sshll.u32 [#allocation8], 4
          %s297 = int_to_ptr.vmem [resolvable:$true] %s296
          %302 = dma.hbm_to_vmem [thread:$0]  %s5, 4096, %s297, [#allocation9], 256, 256, 16
        $region32: #{tpu_custom_call.1} parent=11 // pred_fallthru
          _
        // Predicated region
        $region33: #{tpu_custom_call.1} parent=11 // pred_check
          %p303 = pneg %p175
        $region34: #{tpu_custom_call.1} parent=11 // pred_check_branch
          %305 = sbr.rel (%p303) target = $region36
        $region35: #{tpu_custom_call.1} parent=11 // pred_region
          _
        $region36: #{tpu_custom_call.1} parent=11 // pred_fallthru
          _
        // Predicated region
        $region37: #{tpu_custom_call.1} parent=11 // pred_check
          %p306 = pneg %p196
        $region38: #{tpu_custom_call.1} parent=11 // pred_check_branch
          %308 = sbr.rel (%p306) target = $region40
        $region39: #{tpu_custom_call.1} parent=11 // pred_region
          %s310 = ssub.s32 4096, 4096
          %311 = vsyncadd [#allocation9], %s310
          %s312 = sshll.u32 [#allocation10], 4
          %s313 = int_to_ptr.vmem [resolvable:$true] %s312
          %318 = dma.hbm_to_vmem [thread:$0]  %s7, 4096, %s313, [#allocation9], 128, 128, 8
        $region40: #{tpu_custom_call.1} parent=11 // pred_fallthru
          _
        // Predicated region
        $region41: #{tpu_custom_call.1} parent=11 // pred_check
          %p319 = pneg %p217
        $region42: #{tpu_custom_call.1} parent=11 // pred_check_branch
          %321 = sbr.rel (%p319) target = $region44
        $region43: #{tpu_custom_call.1} parent=11 // pred_region
          _
        $region44: #{tpu_custom_call.1} parent=11 // pred_fallthru
          _
      $region12: #{tpu_custom_call.1} parent=5 // pred_fallthru
        _
      %p322 = scmp.lt.s32.totalorder %s23, 2
      // Predicated region
      $region45: #{tpu_custom_call.1} parent=5 // pred_check
        %p323 = pneg %p322
      $region46: #{tpu_custom_call.1} parent=5 // pred_check_branch
        %325 = sbr.rel (%p323) target = $region48
      $region47: #{tpu_custom_call.1} parent=5 // pred_region
        // Predicated region
        $region49: #{tpu_custom_call.1} parent=47 // pred_check
          %p326 = pneg %p43
        $region50: #{tpu_custom_call.1} parent=47 // pred_check_branch
          %328 = sbr.rel (%p326) target = $region52
        $region51: #{tpu_custom_call.1} parent=47 // pred_region
          %s329 = sand.u32 %s33, 1
          %s330 = scalar_lea.sflag [#allocation3], %s329
          %s331 = sand.u32 %s33, 1
          %s332 = smul.addr %s331, 8
          %s333 = scalar_lea.vmem [#allocation2], %s332
          %s335 = ssub.s32 128, 128
          %336 = vsyncadd %s330, %s335
          %s337 = smul.addr %s23, 128
          %s338 = scalar_lea.hbm %s0, %s337
          %s340 = sshll.u32 %s333, 4
          %s341 = int_to_ptr.vmem [resolvable:$true] %s340
          %343 = dma.hbm_to_vmem [thread:$0]  %s338, 128, %s341, %s330
        $region52: #{tpu_custom_call.1} parent=47 // pred_fallthru
          _
      $region48: #{tpu_custom_call.1} parent=5 // pred_fallthru
        _
      %p344 = scmp.le.s32.totalorder 1, %s23
      %p345 = scmp.lt.s32.totalorder %s23, 3
      %p346 = pnand %p344, %p345
      %p347 = pneg %p346
      // Predicated region
      $region53: #{tpu_custom_call.1} parent=5 // pred_check
        _
      $region54: #{tpu_custom_call.1} parent=5 // pred_check_branch
        %349 = sbr.rel (%p346) target = $region56
      $region55: #{tpu_custom_call.1} parent=5 // pred_region
        %s350 = ssub.s32 %s23, 1
        %s351 = sand.u32 %s36, 1
        %s352 = scalar_lea.sflag [#allocation3], %s351
        %s353 = sand.u32 %s36, 1
        %s354 = smul.addr %s353, 8
        %s355 = scalar_lea.vmem [#allocation2], %s354
        // Predicated region
        $region57: #{tpu_custom_call.1} parent=55 // pred_check
          %p356 = pneg %p49
        $region58: #{tpu_custom_call.1} parent=55 // pred_check_branch
          %358 = sbr.rel (%p356) target = $region60
        $region59: #{tpu_custom_call.1} parent=55 // pred_region
          %359 = dma.done %s352, 128
        $region60: #{tpu_custom_call.1} parent=55 // pred_fallthru
          _
        // Predicated region
        $region61: #{tpu_custom_call.1} parent=55 // pred_check
          %p360 = pneg %p70
        $region62: #{tpu_custom_call.1} parent=55 // pred_check_branch
          %362 = sbr.rel (%p360) target = $region64
        $region63: #{tpu_custom_call.1} parent=55 // pred_region
          %363 = dma.done [#allocation6], 2048
        $region64: #{tpu_custom_call.1} parent=55 // pred_fallthru
          _
        // Predicated region
        $region65: #{tpu_custom_call.1} parent=55 // pred_check
          %p364 = pneg %p112
        $region66: #{tpu_custom_call.1} parent=55 // pred_check_branch
          %366 = sbr.rel (%p364) target = $region68
        $region67: #{tpu_custom_call.1} parent=55 // pred_region
          %367 = dma.done [#allocation6], 4096
        $region68: #{tpu_custom_call.1} parent=55 // pred_fallthru
          _
        // Predicated region
        $region69: #{tpu_custom_call.1} parent=55 // pred_check
          %p368 = pneg %p154
        $region70: #{tpu_custom_call.1} parent=55 // pred_check_branch
          %370 = sbr.rel (%p368) target = $region72
        $region71: #{tpu_custom_call.1} parent=55 // pred_region
          %371 = dma.done [#allocation9], 4096
        $region72: #{tpu_custom_call.1} parent=55 // pred_fallthru
          _
        // Predicated region
        $region73: #{tpu_custom_call.1} parent=55 // pred_check
          %p372 = pneg %p196
        $region74: #{tpu_custom_call.1} parent=55 // pred_check_branch
          %374 = sbr.rel (%p372) target = $region76
        $region75: #{tpu_custom_call.1} parent=55 // pred_region
          %375 = dma.done [#allocation9], 4096
        $region76: #{tpu_custom_call.1} parent=55 // pred_fallthru
          _
        %s376 = sand.u32 %s36, 1
        %s377 = scalar_lea.sflag [#allocation3], %s376
        %s378 = sand.u32 %s36, 1
        %s379 = smul.addr %s378, 8
        %s380 = scalar_lea.vmem [#allocation2], %s379
        %p381 = pneg %p49
        %p382 = pneg %p46
        %p383 = pneg %p70
        %p384 = pneg %p67
        %p385 = pneg %p91
        %p386 = pneg %p88
        %p387 = pneg %p112
        %p388 = pneg %p109
        %p389 = pneg %p133
        %p390 = pneg %p130
        %p391 = pneg %p154
        %p392 = pneg %p151
        %p393 = pneg %p175
        %p394 = pneg %p172
        %p395 = pneg %p196
        %p396 = pneg %p193
        %p397 = pneg %p217
        %p398 = pneg %p214
        %p399 = pneg %p243
        %p400 = pneg %p240
        %s401 = sand.u32 %s230, 1
        %s402 = scalar_lea.sflag [#allocation4], %s401
        %s403 = sand.u32 %s230, 1
        %s404 = smul.addr %s403, 8
        %s405 = scalar_lea.vmem [#allocation11], %s404
        %v406 = vld [vmem:[%s355] sm:$0xff]
        %v407 = vld [vmem:[#allocation5] sm:$0xff]
        %v408 = vld [vmem:[#allocation5 + $0x8] sm:$0xff]
        %v409 = vld [vmem:[#allocation5 + $0x10] sm:$0xff]
        %v410 = vld [vmem:[#allocation5 + $0x18] sm:$0xff]
        %v411 = vld [vmem:[#allocation5 + $0x20] sm:$0xff]
        %v412 = vld [vmem:[#allocation5 + $0x28] sm:$0xff]
        %v413 = vld [vmem:[#allocation5 + $0x30] sm:$0xff]
        %v414 = vld [vmem:[#allocation5 + $0x38] sm:$0xff]
        %v415 = vld [vmem:[#allocation5 + $0x40] sm:$0xff]
        %v416 = vld [vmem:[#allocation5 + $0x48] sm:$0xff]
        %v417 = vld [vmem:[#allocation5 + $0x50] sm:$0xff]
        %v418 = vld [vmem:[#allocation5 + $0x58] sm:$0xff]
        %v419 = vld [vmem:[#allocation5 + $0x60] sm:$0xff]
        %v420 = vld [vmem:[#allocation5 + $0x68] sm:$0xff]
        %v421 = vld [vmem:[#allocation5 + $0x70] sm:$0xff]
        %v422 = vld [vmem:[#allocation5 + $0x78] sm:$0xff]
        %v423 = vld [vmem:[%s2] sm:$0x3]
        %v425 = vlaneseq
        %v426 = vshrl.u32 %v425, 7
        %v427 = vsub.s32 0, %v426
        %v428 = vrot.slane %v423, %v427
        %v429 = vlaneseq
        %v430 = vshrl.u32 %v429, 7
        %v431 = vsub.s32 1, %v430
        %v432 = vrot.slane %v423, %v431
        %vm435 = vcmask 523264
        %v437 = vsel %vm435, %v406, 0
        %439 = vmatprep.subr.mxu0 %v408
        %440 = vmatpush1.msra.mxu0 %v407
        %441 = vmatprep.subr.mxu0 %v410
        %442 = vmatpush1.msra.mxu0 %v409
        %443 = vmatprep.subr.mxu0 %v412
        %444 = vmatpush1.msra.mxu0 %v411
        %445 = vmatprep.subr.mxu0 %v414
        %446 = vmatpush1.msra.mxu0 %v413
        %447 = vmatprep.subr.mxu0 %v416
        %448 = vmatpush1.msra.mxu0 %v415
        %449 = vmatprep.subr.mxu0 %v418
        %450 = vmatpush1.msra.mxu0 %v417
        %451 = vmatprep.subr.mxu0 %v420
        %452 = vmatpush1.msra.mxu0 %v419
        %453 = vmatprep.subr.mxu0 %v422
        %454 = vmatpush1.msra.mxu0 %v421
        %455 = vmatprep.subr.mxu0 0.0
        %456 = vmatpush1.msra.mxu0 0.0
        %457 = vmatprep.subr.mxu0 0.0
        %458 = vmatpush1.msra.mxu0 0.0
        %459 = vmatprep.subr.mxu0 0.0
        %460 = vmatpush1.msra.mxu0 0.0
        %461 = vmatprep.subr.mxu0 0.0
        %462 = vmatpush1.msra.mxu0 0.0
        %463 = vmatprep.subr.mxu0 0.0
        %464 = vmatpush1.msra.mxu0 0.0
        %465 = vmatprep.subr.mxu0 0.0
        %466 = vmatpush1.msra.mxu0 0.0
        %467 = vmatprep.subr.mxu0 0.0
        %468 = vmatpush1.msra.mxu0 0.0
        %469 = vmatprep.subr.mxu0 0.0
        %470 = vmatpush1.msra.mxu0 0.0
        %471 = vmatprep.subr.mxu0 0.0
        %472 = vmatpush1.msra.mxu0 0.0
        %473 = vmatprep.subr.mxu0 0.0
        %474 = vmatpush1.msra.mxu0 0.0
        %475 = vmatprep.subr.mxu0 0.0
        %476 = vmatpush1.msra.mxu0 0.0
        %477 = vmatprep.subr.mxu0 0.0
        %478 = vmatpush1.msra.mxu0 0.0
        %479 = vmatprep.subr.mxu0 0.0
        %480 = vmatpush1.msra.mxu0 0.0
        %481 = vmatprep.subr.mxu0 0.0
        %482 = vmatpush1.msra.mxu0 0.0
        %483 = vmatprep.subr.mxu0 0.0
        %484 = vmatpush1.msra.mxu0 0.0
        %485 = vmatprep.subr.mxu0 0.0
        %486 = vmatpush1.msra.mxu0 0.0
        %487 = vmatprep.subr.mxu0 0.0
        %488 = vmatpush1.msra.mxu0 0.0
        %489 = vmatprep.subr.mxu0 0.0
        %490 = vmatpush1.msra.mxu0 0.0
        %491 = vmatprep.subr.mxu0 0.0
        %492 = vmatpush1.msra.mxu0 0.0
        %493 = vmatprep.subr.mxu0 0.0
        %494 = vmatpush1.msra.mxu0 0.0
        %495 = vmatprep.subr.mxu0 0.0
        %496 = vmatpush1.msra.mxu0 0.0
        %497 = vmatprep.subr.mxu0 0.0
        %498 = vmatpush1.msra.mxu0 0.0
        %499 = vmatprep.subr.mxu0 0.0
        %500 = vmatpush1.msra.mxu0 0.0
        %501 = vmatprep.subr.mxu0 0.0
        %502 = vmatpush1.msra.mxu0 0.0
        %503 = vmatprep.mubr.f32.mxu0 0.0
        %504 = vmatmul.mubr.f32.gmra.mrb[0].mxu0 %v437
        %v505 = vpop.f32.mrb[0].mxu0
        %v506 = vadd.f32 %v428, %v505
        %v507 = vpop.f32.mrb[0].mxu0
        %v508 = vadd.f32 %v432, %v507
        %509 = vdwg.mxu0
        %v510 = vmax.f32 %v506, 0.0
        %v511 = vmax.f32 %v508, 0.0
        %v512 = vadd.f32 %v510, %v511
        %513 = vadd.xlane.f32.xlu0 %v512
        %v514 = vpop.xlane.xlu0 %513
        %v515 = vrcp.pop 256.0
        %v516 = vmul.f32 %v514, %v515
        %v517 = vmul.f32 %v510, %v510
        %v518 = vmul.f32 %v511, %v511
        %v519 = vadd.f32 %v517, %v518
        %520 = vadd.xlane.f32.xlu0 %v519
        %v521 = vpop.xlane.xlu0 %520
        %v522 = vmul.f32 %v521, %v515
        %v523 = vmul.f32 %v516, %v516
        %v524 = vsub.f32 %v522, %v523
        %v525 = vmax.f32 %v524, 0.0
        %v526 = vsub.f32 %v510, %v516
        %v527 = vsub.f32 %v511, %v516
        %v528 = vadd.f32 %v525, 1e-05
        %v529 = vrsqrt.pop %v528
        %v530 = vmul.f32 %v526, %v529
        %v531 = vmul.f32 %v527, %v529
        %v532 = vld [vmem:[#allocation7] sm:$0xff]
        %v533 = vld [vmem:[#allocation7 + $0x8] sm:$0xff]
        %v534 = vld [vmem:[#allocation7 + $0x10] sm:$0xff]
        %v535 = vld [vmem:[#allocation7 + $0x18] sm:$0xff]
        %v536 = vld [vmem:[#allocation7 + $0x20] sm:$0xff]
        %v537 = vld [vmem:[#allocation7 + $0x28] sm:$0xff]
        %v538 = vld [vmem:[#allocation7 + $0x30] sm:$0xff]
        %v539 = vld [vmem:[#allocation7 + $0x38] sm:$0xff]
        %v540 = vld [vmem:[#allocation7 + $0x40] sm:$0xff]
        %v541 = vld [vmem:[#allocation7 + $0x48] sm:$0xff]
        %v542 = vld [vmem:[#allocation7 + $0x50] sm:$0xff]
        %v543 = vld [vmem:[#allocation7 + $0x58] sm:$0xff]
        %v544 = vld [vmem:[#allocation7 + $0x60] sm:$0xff]
        %v545 = vld [vmem:[#allocation7 + $0x68] sm:$0xff]
        %v546 = vld [vmem:[#allocation7 + $0x70] sm:$0xff]
        %v547 = vld [vmem:[#allocation7 + $0x78] sm:$0xff]
        %v548 = vld [vmem:[#allocation7 + $0x80] sm:$0xff]
        %v549 = vld [vmem:[#allocation7 + $0x88] sm:$0xff]
        %v550 = vld [vmem:[#allocation7 + $0x90] sm:$0xff]
        %v551 = vld [vmem:[#allocation7 + $0x98] sm:$0xff]
        %v552 = vld [vmem:[#allocation7 + $0xa0] sm:$0xff]
        %v553 = vld [vmem:[#allocation7 + $0xa8] sm:$0xff]
        %v554 = vld [vmem:[#allocation7 + $0xb0] sm:$0xff]
        %v555 = vld [vmem:[#allocation7 + $0xb8] sm:$0xff]
        %v556 = vld [vmem:[#allocation7 + $0xc0] sm:$0xff]
        %v557 = vld [vmem:[#allocation7 + $0xc8] sm:$0xff]
        %v558 = vld [vmem:[#allocation7 + $0xd0] sm:$0xff]
        %v559 = vld [vmem:[#allocation7 + $0xd8] sm:$0xff]
        %v560 = vld [vmem:[#allocation7 + $0xe0] sm:$0xff]
        %v561 = vld [vmem:[#allocation7 + $0xe8] sm:$0xff]
        %v562 = vld [vmem:[#allocation7 + $0xf0] sm:$0xff]
        %v563 = vld [vmem:[#allocation7 + $0xf8] sm:$0xff]
        %v564 = vld [vmem:[%s4] sm:$0x1]
        %v566 = vlaneseq
        %v567 = vshrl.u32 %v566, 7
        %v568 = vsub.s32 0, %v567
        %v569 = vrot.slane %v564, %v568
        %571 = vmatprep.subr.mxu0 0.0
        %572 = vmatpush1.msra.mxu0 %v532
        %573 = vmatprep.subr.mxu0 0.0
        %574 = vmatpush1.msra.mxu0 %v533
        %575 = vmatprep.subr.mxu0 0.0
        %576 = vmatpush1.msra.mxu0 %v534
        %577 = vmatprep.subr.mxu0 0.0
        %578 = vmatpush1.msra.mxu0 %v535
        %579 = vmatprep.subr.mxu0 0.0
        %580 = vmatpush1.msra.mxu0 %v536
        %581 = vmatprep.subr.mxu0 0.0
        %582 = vmatpush1.msra.mxu0 %v537
        %583 = vmatprep.subr.mxu0 0.0
        %584 = vmatpush1.msra.mxu0 %v538
        %585 = vmatprep.subr.mxu0 0.0
        %586 = vmatpush1.msra.mxu0 %v539
        %587 = vmatprep.subr.mxu0 0.0
        %588 = vmatpush1.msra.mxu0 %v540
        %589 = vmatprep.subr.mxu0 0.0
        %590 = vmatpush1.msra.mxu0 %v541
        %591 = vmatprep.subr.mxu0 0.0
        %592 = vmatpush1.msra.mxu0 %v542
        %593 = vmatprep.subr.mxu0 0.0
        %594 = vmatpush1.msra.mxu0 %v543
        %595 = vmatprep.subr.mxu0 0.0
        %596 = vmatpush1.msra.mxu0 %v544
        %597 = vmatprep.subr.mxu0 0.0
        %598 = vmatpush1.msra.mxu0 %v545
        %599 = vmatprep.subr.mxu0 0.0
        %600 = vmatpush1.msra.mxu0 %v546
        %601 = vmatprep.subr.mxu0 0.0
        %602 = vmatpush1.msra.mxu0 %v547
        %603 = vmatprep.subr.mxu0 0.0
        %604 = vmatpush1.msra.mxu0 %v548
        %605 = vmatprep.subr.mxu0 0.0
        %606 = vmatpush1.msra.mxu0 %v549
        %607 = vmatprep.subr.mxu0 0.0
        %608 = vmatpush1.msra.mxu0 %v550
        %609 = vmatprep.subr.mxu0 0.0
        %610 = vmatpush1.msra.mxu0 %v551
        %611 = vmatprep.subr.mxu0 0.0
        %612 = vmatpush1.msra.mxu0 %v552
        %613 = vmatprep.subr.mxu0 0.0
        %614 = vmatpush1.msra.mxu0 %v553
        %615 = vmatprep.subr.mxu0 0.0
        %616 = vmatpush1.msra.mxu0 %v554
        %617 = vmatprep.subr.mxu0 0.0
        %618 = vmatpush1.msra.mxu0 %v555
        %619 = vmatprep.subr.mxu0 0.0
        %620 = vmatpush1.msra.mxu0 %v556
        %621 = vmatprep.subr.mxu0 0.0
        %622 = vmatpush1.msra.mxu0 %v557
        %623 = vmatprep.subr.mxu0 0.0
        %624 = vmatpush1.msra.mxu0 %v558
        %625 = vmatprep.subr.mxu0 0.0
        %626 = vmatpush1.msra.mxu0 %v559
        %627 = vmatprep.subr.mxu0 0.0
        %628 = vmatpush1.msra.mxu0 %v560
        %629 = vmatprep.subr.mxu0 0.0
        %630 = vmatpush1.msra.mxu0 %v561
        %631 = vmatprep.subr.mxu0 0.0
        %632 = vmatpush1.msra.mxu0 %v562
        %633 = vmatprep.subr.mxu0 0.0
        %634 = vmatpush1.msra.mxu0 %v563
        %635 = vmatprep.mubr.f32.mxu0 %v531
        %636 = vmatmul.mubr.f32.gmra.mrb[0].mxu0 %v530
        %v637 = vpop.f32.mrb[0].mxu0
        %v638 = vadd.f32 %v569, %v637
        %v639 = vpop.f32.mrb[0].mxu0
        %640 = vdwg.mxu0
        %v641 = vmax.f32 %v638, 0.0
        %642 = vadd.xlane.f32.xlu0 %v641
        %v643 = vpop.xlane.xlu0 %642
        %v644 = vrcp.pop 128.0
        %v645 = vmul.f32 %v643, %v644
        %v646 = vmul.f32 %v641, %v641
        %647 = vadd.xlane.f32.xlu0 %v646
        %v648 = vpop.xlane.xlu0 %647
        %v649 = vmul.f32 %v648, %v644
        %v650 = vmul.f32 %v645, %v645
        %v651 = vsub.f32 %v649, %v650
        %v652 = vmax.f32 %v651, 0.0
        %v653 = vsub.f32 %v641, %v645
        %v654 = vadd.f32 %v652, 1e-05
        %v655 = vrsqrt.pop %v654
        %v656 = vmul.f32 %v653, %v655
        %v657 = vld [vmem:[#allocation8] sm:$0xff]
        %v658 = vld [vmem:[#allocation8 + $0x8] sm:$0xff]
        %v659 = vld [vmem:[#allocation8 + $0x10] sm:$0xff]
        %v660 = vld [vmem:[#allocation8 + $0x18] sm:$0xff]
        %v661 = vld [vmem:[#allocation8 + $0x20] sm:$0xff]
        %v662 = vld [vmem:[#allocation8 + $0x28] sm:$0xff]
        %v663 = vld [vmem:[#allocation8 + $0x30] sm:$0xff]
        %v664 = vld [vmem:[#allocation8 + $0x38] sm:$0xff]
        %v665 = vld [vmem:[#allocation8 + $0x40] sm:$0xff]
        %v666 = vld [vmem:[#allocation8 + $0x48] sm:$0xff]
        %v667 = vld [vmem:[#allocation8 + $0x50] sm:$0xff]
        %v668 = vld [vmem:[#allocation8 + $0x58] sm:$0xff]
        %v669 = vld [vmem:[#allocation8 + $0x60] sm:$0xff]
        %v670 = vld [vmem:[#allocation8 + $0x68] sm:$0xff]
        %v671 = vld [vmem:[#allocation8 + $0x70] sm:$0xff]
        %v672 = vld [vmem:[#allocation8 + $0x78] sm:$0xff]
        %v673 = vld [vmem:[#allocation8 + $0x80] sm:$0xff]
        %v674 = vld [vmem:[#allocation8 + $0x88] sm:$0xff]
        %v675 = vld [vmem:[#allocation8 + $0x90] sm:$0xff]
        %v676 = vld [vmem:[#allocation8 + $0x98] sm:$0xff]
        %v677 = vld [vmem:[#allocation8 + $0xa0] sm:$0xff]
        %v678 = vld [vmem:[#allocation8 + $0xa8] sm:$0xff]
        %v679 = vld [vmem:[#allocation8 + $0xb0] sm:$0xff]
        %v680 = vld [vmem:[#allocation8 + $0xb8] sm:$0xff]
        %v681 = vld [vmem:[#allocation8 + $0xc0] sm:$0xff]
        %v682 = vld [vmem:[#allocation8 + $0xc8] sm:$0xff]
        %v683 = vld [vmem:[#allocation8 + $0xd0] sm:$0xff]
        %v684 = vld [vmem:[#allocation8 + $0xd8] sm:$0xff]
        %v685 = vld [vmem:[#allocation8 + $0xe0] sm:$0xff]
        %v686 = vld [vmem:[#allocation8 + $0xe8] sm:$0xff]
        %v687 = vld [vmem:[#allocation8 + $0xf0] sm:$0xff]
        %v688 = vld [vmem:[#allocation8 + $0xf8] sm:$0xff]
        %v689 = vld [vmem:[%s6] sm:$0x3]
        %v691 = vlaneseq
        %v692 = vshrl.u32 %v691, 7
        %v693 = vsub.s32 0, %v692
        %v694 = vrot.slane %v689, %v693
        %v695 = vlaneseq
        %v696 = vshrl.u32 %v695, 7
        %v697 = vsub.s32 1, %v696
        %v698 = vrot.slane %v689, %v697
        %701 = vmatprep.subr.mxu0 %v658
        %702 = vmatpush1.msra.mxu0 %v657
        %703 = vmatprep.subr.mxu0 %v660
        %704 = vmatpush1.msra.mxu0 %v659
        %705 = vmatprep.subr.mxu0 %v662
        %706 = vmatpush1.msra.mxu0 %v661
        %707 = vmatprep.subr.mxu0 %v664
        %708 = vmatpush1.msra.mxu0 %v663
        %709 = vmatprep.subr.mxu0 %v666
        %710 = vmatpush1.msra.mxu0 %v665
        %711 = vmatprep.subr.mxu0 %v668
        %712 = vmatpush1.msra.mxu0 %v667
        %713 = vmatprep.subr.mxu0 %v670
        %714 = vmatpush1.msra.mxu0 %v669
        %715 = vmatprep.subr.mxu0 %v672
        %716 = vmatpush1.msra.mxu0 %v671
        %717 = vmatprep.subr.mxu0 %v674
        %718 = vmatpush1.msra.mxu0 %v673
        %719 = vmatprep.subr.mxu0 %v676
        %720 = vmatpush1.msra.mxu0 %v675
        %721 = vmatprep.subr.mxu0 %v678
        %722 = vmatpush1.msra.mxu0 %v677
        %723 = vmatprep.subr.mxu0 %v680
        %724 = vmatpush1.msra.mxu0 %v679
        %725 = vmatprep.subr.mxu0 %v682
        %726 = vmatpush1.msra.mxu0 %v681
        %727 = vmatprep.subr.mxu0 %v684
        %728 = vmatpush1.msra.mxu0 %v683
        %729 = vmatprep.subr.mxu0 %v686
        %730 = vmatpush1.msra.mxu0 %v685
        %731 = vmatprep.subr.mxu0 %v688
        %732 = vmatpush1.msra.mxu0 %v687
        %733 = vmatprep.subr.mxu0 0.0
        %734 = vmatpush1.msra.mxu0 0.0
        %735 = vmatprep.subr.mxu0 0.0
        %736 = vmatpush1.msra.mxu0 0.0
        %737 = vmatprep.subr.mxu0 0.0
        %738 = vmatpush1.msra.mxu0 0.0
        %739 = vmatprep.subr.mxu0 0.0
        %740 = vmatpush1.msra.mxu0 0.0
        %741 = vmatprep.subr.mxu0 0.0
        %742 = vmatpush1.msra.mxu0 0.0
        %743 = vmatprep.subr.mxu0 0.0
        %744 = vmatpush1.msra.mxu0 0.0
        %745 = vmatprep.subr.mxu0 0.0
        %746 = vmatpush1.msra.mxu0 0.0
        %747 = vmatprep.subr.mxu0 0.0
        %748 = vmatpush1.msra.mxu0 0.0
        %749 = vmatprep.subr.mxu0 0.0
        %750 = vmatpush1.msra.mxu0 0.0
        %751 = vmatprep.subr.mxu0 0.0
        %752 = vmatpush1.msra.mxu0 0.0
        %753 = vmatprep.subr.mxu0 0.0
        %754 = vmatpush1.msra.mxu0 0.0
        %755 = vmatprep.subr.mxu0 0.0
        %756 = vmatpush1.msra.mxu0 0.0
        %757 = vmatprep.subr.mxu0 0.0
        %758 = vmatpush1.msra.mxu0 0.0
        %759 = vmatprep.subr.mxu0 0.0
        %760 = vmatpush1.msra.mxu0 0.0
        %761 = vmatprep.subr.mxu0 0.0
        %762 = vmatpush1.msra.mxu0 0.0
        %763 = vmatprep.subr.mxu0 0.0
        %764 = vmatpush1.msra.mxu0 0.0
        %765 = vmatprep.mubr.f32.mxu0 0.0
        %766 = vmatmul.mubr.f32.gmra.mrb[0].mxu0 %v656
        %v767 = vpop.f32.mrb[0].mxu0
        %v768 = vadd.f32 %v694, %v767
        %v769 = vpop.f32.mrb[0].mxu0
        %v770 = vadd.f32 %v698, %v769
        %771 = vdwg.mxu0
        %v772 = vmax.f32 %v768, 0.0
        %v773 = vmax.f32 %v770, 0.0
        %774 = vadd.xlane.f32.xlu0 %v772
        %v775 = vpop.xlane.xlu0 %774
        %v776 = vmul.f32 %v775, %v644
        %v777 = vmul.f32 %v772, %v772
        %778 = vadd.xlane.f32.xlu0 %v777
        %v779 = vpop.xlane.xlu0 %778
        %v780 = vmul.f32 %v779, %v644
        %v781 = vmul.f32 %v776, %v776
        %v782 = vsub.f32 %v780, %v781
        %v783 = vmax.f32 %v782, 0.0
        %v784 = vsub.f32 %v772, %v776
        %v785 = vadd.f32 %v783, 1e-05
        %v786 = vrsqrt.pop %v785
        %v787 = vmul.f32 %v784, %v786
        %788 = vadd.xlane.f32.xlu0 %v773
        %v789 = vpop.xlane.xlu0 %788
        %v790 = vmul.f32 %v789, %v644
        %v791 = vmul.f32 %v773, %v773
        %792 = vadd.xlane.f32.xlu0 %v791
        %v793 = vpop.xlane.xlu0 %792
        %v794 = vmul.f32 %v793, %v644
        %v795 = vmul.f32 %v790, %v790
        %v796 = vsub.f32 %v794, %v795
        %v797 = vmax.f32 %v796, 0.0
        %v798 = vsub.f32 %v773, %v790
        %v799 = vadd.f32 %v797, 1e-05
        %v800 = vrsqrt.pop %v799
        %v801 = vmul.f32 %v798, %v800
        %v802 = vld [vmem:[#allocation10] sm:$0xff]
        %v803 = vld [vmem:[#allocation10 + $0x8] sm:$0xff]
        %v804 = vld [vmem:[#allocation10 + $0x10] sm:$0xff]
        %v805 = vld [vmem:[#allocation10 + $0x18] sm:$0xff]
        %v806 = vld [vmem:[#allocation10 + $0x20] sm:$0xff]
        %v807 = vld [vmem:[#allocation10 + $0x28] sm:$0xff]
        %v808 = vld [vmem:[#allocation10 + $0x30] sm:$0xff]
        %v809 = vld [vmem:[#allocation10 + $0x38] sm:$0xff]
        %v810 = vld [vmem:[#allocation10 + $0x40] sm:$0xff]
        %v811 = vld [vmem:[#allocation10 + $0x48] sm:$0xff]
        %v812 = vld [vmem:[#allocation10 + $0x50] sm:$0xff]
        %v813 = vld [vmem:[#allocation10 + $0x58] sm:$0xff]
        %v814 = vld [vmem:[#allocation10 + $0x60] sm:$0xff]
        %v815 = vld [vmem:[#allocation10 + $0x68] sm:$0xff]
        %v816 = vld [vmem:[#allocation10 + $0x70] sm:$0xff]
        %v817 = vld [vmem:[#allocation10 + $0x78] sm:$0xff]
        %v818 = vld [vmem:[#allocation10 + $0x80] sm:$0xff]
        %v819 = vld [vmem:[#allocation10 + $0x88] sm:$0xff]
        %v820 = vld [vmem:[#allocation10 + $0x90] sm:$0xff]
        %v821 = vld [vmem:[#allocation10 + $0x98] sm:$0xff]
        %v822 = vld [vmem:[#allocation10 + $0xa0] sm:$0xff]
        %v823 = vld [vmem:[#allocation10 + $0xa8] sm:$0xff]
        %v824 = vld [vmem:[#allocation10 + $0xb0] sm:$0xff]
        %v825 = vld [vmem:[#allocation10 + $0xb8] sm:$0xff]
        %v826 = vld [vmem:[#allocation10 + $0xc0] sm:$0xff]
        %v827 = vld [vmem:[#allocation10 + $0xc8] sm:$0xff]
        %v828 = vld [vmem:[#allocation10 + $0xd0] sm:$0xff]
        %v829 = vld [vmem:[#allocation10 + $0xd8] sm:$0xff]
        %v830 = vld [vmem:[#allocation10 + $0xe0] sm:$0xff]
        %v831 = vld [vmem:[#allocation10 + $0xe8] sm:$0xff]
        %v832 = vld [vmem:[#allocation10 + $0xf0] sm:$0xff]
        %v833 = vld [vmem:[#allocation10 + $0xf8] sm:$0xff]
        %v834 = vld [vmem:[%s8] sm:$0x1]
        %v836 = vlaneseq
        %v837 = vshrl.u32 %v836, 7
        %v838 = vsub.s32 0, %v837
        %v839 = vrot.slane %v834, %v838
        %841 = vmatprep.subr.mxu0 0.0
        %842 = vmatpush1.msra.mxu0 %v802
        %843 = vmatprep.subr.mxu0 0.0
        %844 = vmatpush1.msra.mxu0 %v803
        %845 = vmatprep.subr.mxu0 0.0
        %846 = vmatpush1.msra.mxu0 %v804
        %847 = vmatprep.subr.mxu0 0.0
        %848 = vmatpush1.msra.mxu0 %v805
        %849 = vmatprep.subr.mxu0 0.0
        %850 = vmatpush1.msra.mxu0 %v806
        %851 = vmatprep.subr.mxu0 0.0
        %852 = vmatpush1.msra.mxu0 %v807
        %853 = vmatprep.subr.mxu0 0.0
        %854 = vmatpush1.msra.mxu0 %v808
        %855 = vmatprep.subr.mxu0 0.0
        %856 = vmatpush1.msra.mxu0 %v809
        %857 = vmatprep.subr.mxu0 0.0
        %858 = vmatpush1.msra.mxu0 %v810
        %859 = vmatprep.subr.mxu0 0.0
        %860 = vmatpush1.msra.mxu0 %v811
        %861 = vmatprep.subr.mxu0 0.0
        %862 = vmatpush1.msra.mxu0 %v812
        %863 = vmatprep.subr.mxu0 0.0
        %864 = vmatpush1.msra.mxu0 %v813
        %865 = vmatprep.subr.mxu0 0.0
        %866 = vmatpush1.msra.mxu0 %v814
        %867 = vmatprep.subr.mxu0 0.0
        %868 = vmatpush1.msra.mxu0 %v815
        %869 = vmatprep.subr.mxu0 0.0
        %870 = vmatpush1.msra.mxu0 %v816
        %871 = vmatprep.subr.mxu0 0.0
        %872 = vmatpush1.msra.mxu0 %v817
        %873 = vmatprep.subr.mxu0 0.0
        %874 = vmatpush1.msra.mxu0 %v818
        %875 = vmatprep.subr.mxu0 0.0
        %876 = vmatpush1.msra.mxu0 %v819
        %877 = vmatprep.subr.mxu0 0.0
        %878 = vmatpush1.msra.mxu0 %v820
        %879 = vmatprep.subr.mxu0 0.0
        %880 = vmatpush1.msra.mxu0 %v821
        %881 = vmatprep.subr.mxu0 0.0
        %882 = vmatpush1.msra.mxu0 %v822
        %883 = vmatprep.subr.mxu0 0.0
        %884 = vmatpush1.msra.mxu0 %v823
        %885 = vmatprep.subr.mxu0 0.0
        %886 = vmatpush1.msra.mxu0 %v824
        %887 = vmatprep.subr.mxu0 0.0
        %888 = vmatpush1.msra.mxu0 %v825
        %889 = vmatprep.subr.mxu0 0.0
        %890 = vmatpush1.msra.mxu0 %v826
        %891 = vmatprep.subr.mxu0 0.0
        %892 = vmatpush1.msra.mxu0 %v827
        %893 = vmatprep.subr.mxu0 0.0
        %894 = vmatpush1.msra.mxu0 %v828
        %895 = vmatprep.subr.mxu0 0.0
        %896 = vmatpush1.msra.mxu0 %v829
        %897 = vmatprep.subr.mxu0 0.0
        %898 = vmatpush1.msra.mxu0 %v830
        %899 = vmatprep.subr.mxu0 0.0
        %900 = vmatpush1.msra.mxu0 %v831
        %901 = vmatprep.subr.mxu0 0.0
        %902 = vmatpush1.msra.mxu0 %v832
        %903 = vmatprep.subr.mxu0 0.0
        %904 = vmatpush1.msra.mxu0 %v833
        %905 = vmatprep.mubr.f32.mxu0 %v801
        %906 = vmatmul.mubr.f32.gmra.mrb[0].mxu0 %v787
        %v907 = vpop.f32.mrb[0].mxu0
        %v908 = vadd.f32 %v839, %v907
        %v909 = vpop.f32.mrb[0].mxu0
        %910 = vdwg.mxu0
        %911 = vadd.xlane.f32.xlu0 %v908
        %v912 = vpop.xlane.xlu0 %911
        %v913 = vsub.f32 %v912, %v908
        %v914 = vmul.f32 %v913, 0.16666667
        %v915 = vsub.f32 %v908, %v914
        %917 = vset.pattern.permute.xlu0 127
        %918 = vperm.xlu0 %917, %v915
        %v919 = vpop.permute.xlu0 %918
        %v921 = vadd.f32 %v908, %v919
        %922 = vst [vmem:[%s405] sm:$0xff] %v921
        %s923 = sand.u32 %s230, 1
        %s924 = scalar_lea.sflag [#allocation4], %s923
        %s925 = sand.u32 %s230, 1
        %s926 = smul.addr %s925, 8
        %s927 = scalar_lea.vmem [#allocation11], %s926
        // Predicated region
        $region77: #{tpu_custom_call.1} parent=55 // pred_check
          %p928 = pneg %p240
        $region78: #{tpu_custom_call.1} parent=55 // pred_check_branch
          %930 = sbr.rel (%p928) target = $region80
        $region79: #{tpu_custom_call.1} parent=55 // pred_region
          %s932 = ssub.s32 128, 128
          %933 = vsyncadd %s924, %s932
          %s934 = smul.addr %s28, 128
          %s935 = scalar_lea.hbm %s9, %s934
          %s937 = sshll.u32 %s927, 4
          %s938 = int_to_ptr.vmem [resolvable:$true] %s937
          %940 = dma.vmem_to_hbm [thread:$0]  %s938, 128, %s935, %s924
        $region80: #{tpu_custom_call.1} parent=55 // pred_fallthru
          _
      $region56: #{tpu_custom_call.1} parent=5 // pred_fallthru
        _
      %p941 = scmp.le.s32.totalorder 2, %s23
      // Predicated region
      $region81: #{tpu_custom_call.1} parent=5 // pred_check
        %p942 = pneg %p941
      $region82: #{tpu_custom_call.1} parent=5 // pred_check_branch
        %944 = sbr.rel (%p942) target = $region84
      $region83: #{tpu_custom_call.1} parent=5 // pred_region
        %s945 = ssub.s32 %s23, 2
        // Predicated region
        $region85: #{tpu_custom_call.1} parent=83 // pred_check
          %p946 = pneg %p246
        $region86: #{tpu_custom_call.1} parent=83 // pred_check_branch
          %948 = sbr.rel (%p946) target = $region88
        $region87: #{tpu_custom_call.1} parent=83 // pred_region
          %s949 = sand.u32 %s231, 1
          %s950 = scalar_lea.sflag [#allocation4], %s949
          %s951 = sand.u32 %s231, 1
          %s952 = smul.addr %s951, 8
          %s953 = scalar_lea.vmem [#allocation11], %s952
          %954 = dma.done %s950, 128
        $region88: #{tpu_custom_call.1} parent=83 // pred_fallthru
          _
      $region84: #{tpu_custom_call.1} parent=5 // pred_fallthru
        _
    $region6: #{tpu_custom_call.1} parent=1 // loop_footer
      %s27 = sadd.s32 1, %s23
    $region7: #{tpu_custom_call.1} parent=1 // loop_footer_branch
      %22 = sbr.rel target = $region3
    $region8: #{tpu_custom_call.1} parent=1 // loop_exit
      _
    %955 = vsyncpa [#allocation3], 1
    %s956 = scalar_lea.sflag [#allocation3], 1
    %957 = vsyncpa %s956, 1
    %958 = vsyncpa [#allocation6], 1
    %959 = vsyncpa [#allocation9], 1
    %960 = vsyncpa [#allocation4], 1
    %s961 = scalar_lea.sflag [#allocation4], 1
    %962 = vsyncpa %s961, 1

</llo_original>
